<compile_context>
chip_gen: v5e
topology: v5e:2x2
jax: 0.10.0
libtpu: 0.0.40
codegen_flags: <defaults>
</compile_context>

<pallas_src>
import jax
import jax.numpy as jnp
from jax.experimental import pallas as pl
from jax.experimental.pallas import tpu as pltpu

LANE = 128      # TPU lane width (last dim)
SUBLANE = 8     # f32 sublane width


def _round_up(n, m):
    return ((n + m - 1) // m) * m


def _mlp_kernel(x_ref, w_ref, out_ref):
    # x_ref  : (in_f, bt)   batch-on-lanes input tile at TRUE feature width
    # w_ref  : (L, P, P)    packed augmented weights (bias in column P-1)
    # out_ref: (out_f, bt)  lane-dense output tile
    in_f, bt = x_ref.shape
    n_layers, P, _ = w_ref.shape
    out_f = out_ref.shape[0]

    # Zero-extend the true-width input to P rows and append the constant-one
    # row (row P-1) that carries the bias through the augmented matmuls.
    parts = [x_ref[...].astype(jnp.float32)]
    if P - 1 - in_f > 0:
        parts.append(jnp.zeros((P - 1 - in_f, bt), jnp.float32))
    parts.append(jnp.ones((1, bt), jnp.float32))
    h = jnp.concatenate(parts, axis=0)                          # (P, bt)

    # Hidden layers: h <- relu(W_aug @ h).  relu(1) == 1 keeps the ones row,
    # padded rows stay exactly 0 (their W_aug rows are zero).
    for l in range(n_layers - 1):                 # statically unrolled
        h = jnp.maximum(
            jnp.dot(w_ref[l], h, preferred_element_type=jnp.float32), 0.0)
    # Output layer (no activation).
    h = jnp.dot(w_ref[n_layers - 1], h, preferred_element_type=jnp.float32)
    out_ref[...] = h[:out_f, :].astype(out_ref.dtype)


def net_class4_forward(x, params, *, batch_tile=16384):
    """x: (B, in_features) float32.
    params: weights w1..w5 stored as (in, out), biases b1..b5 as (1, out)
    (equivalent to PyTorch's x @ W_pt.T + b).  Returns (B, out_features)."""
    B, in_f = x.shape
    w_list = [params[f"w{i}"] for i in range(1, 6)]
    b_list = [params[f"b{i}"] for i in range(1, 6)]
    out_f = w_list[-1].shape[1]

    # Feature padding: widest layer plus one "ones" row, rounded to sublanes.
    dims = [in_f] + [w.shape[1] for w in w_list]
    P = _round_up(max(dims) + 1, SUBLANE)

    # Pack weights as (L, P, P) augmented matrices acting on column activations:
    #   W_aug[:fo, :fi] = W^T,  W_aug[:fo, P-1] = b,  W_aug[P-1, P-1] = 1.
    packs = []
    for w, b in zip(w_list, b_list):
        fi, fo = w.shape
        wa = jnp.zeros((P, P), jnp.float32)
        wa = wa.at[:fo, :fi].set(w.T.astype(jnp.float32))
        wa = wa.at[:fo, P - 1].set(b.reshape(-1).astype(jnp.float32))
        wa = wa.at[P - 1, P - 1].set(1.0)
        packs.append(wa)
    w_packed = jnp.stack(packs)                                 # (5, P, P)

    # Batch tiling (batch lives on the 128-lane axis).
    bt_cap = max(LANE, _round_up(batch_tile, LANE))
    B_lane = _round_up(max(B, 1), LANE)
    if B_lane <= bt_cap:
        if B_lane >= 2 * LANE:
            # Split the whole batch over >=2 grid steps so a second
            # TensorCore (v7x megacore) gets work.
            bt = _round_up(-(-B_lane // 2), LANE)
        else:
            bt = B_lane
    else:
        bt = bt_cap
    B_pad = _round_up(B, bt)
    grid = (B_pad // bt,)

    # Only wrapper-side work: a transpose of the TRUE-width input (+ batch pad).
    x_t = jnp.zeros((in_f, B_pad), jnp.float32).at[:, :B].set(
        x.astype(jnp.float32).T)

    out_t = pl.pallas_call(
        _mlp_kernel,
        out_shape=jax.ShapeDtypeStruct((out_f, B_pad), jnp.float32),
        grid=grid,
        in_specs=[
            pl.BlockSpec((in_f, bt), lambda i: (0, i)),               # x tile
            pl.BlockSpec((w_packed.shape[0], P, P), lambda i: (0, 0, 0)),  # weights, resident
        ],
        out_specs=pl.BlockSpec((out_f, bt), lambda i: (0, i)),
        compiler_params=pltpu.CompilerParams(
            dimension_semantics=("parallel",)),
    )(x_t, w_packed)

    return out_t[:, :B].T                                       # (B, out_f)


def init_params(key, in_features=2, n_h1=4, n_h2=4, n_h3=4, n_h4=4,
                out_features=1):
    """Deterministic synthetic init (uniform, PyTorch-Linear-like fan-in scale).
    Weights stored as (in, out); biases as (1, out)."""
    dims = [(in_features, n_h1), (n_h1, n_h2), (n_h2, n_h3),
            (n_h3, n_h4), (n_h4, out_features)]
    params = {}
    for idx, (fan_in, fan_out) in enumerate(dims, start=1):
        key, kw, kb = jax.random.split(key, 3)
        bound = 1.0 / (fan_in ** 0.5)
        params[f"w{idx}"] = jax.random.uniform(
            kw, (fan_in, fan_out), jnp.float32, -bound, bound)
        params[f"b{idx}"] = jax.random.uniform(
            kb, (1, fan_out), jnp.float32, -bound, bound)
    return params


def _reference_forward(x, p):
    h = x
    for i in range(1, 5):
        h = jnp.maximum(h @ p[f"w{i}"] + p[f"b{i}"], 0.0)
    return h @ p["w5"] + p["b5"]


if __name__ == "__main__":
    key = jax.random.PRNGKey(0)
    kx, kp = jax.random.split(key)

    batch, in_features = 32, 2
    x = jax.random.normal(kx, (batch, in_features), jnp.float32)
    params = init_params(kp, in_features=in_features)

    out = jax.block_until_ready(net_class4_forward(x, params))
    ref = _reference_forward(x, params)
    assert out.shape == (batch, 1)
    assert jnp.allclose(out, ref, atol=1e-5, rtol=1e-5)

    # Multi-tile path: non-lane-multiple batch, grid=(2,) (exercises batch pad
    # + the >=2-step split used for v7x megacore).
    x2 = jax.random.normal(kx, (300, in_features), jnp.float32)
    out2 = jax.block_until_ready(net_class4_forward(x2, params))
    ref2 = _reference_forward(x2, params)
    assert out2.shape == (300, 1)
    assert jnp.allclose(out2, ref2, atol=1e-5, rtol=1e-5)

    print("KERNEL_OK")
</pallas_src>

<mosaic_0001>
module attributes {stable_mosaic.version = 11 : i64} {
  func.func @_mlp_kernel(%arg0: i32, %arg1: memref<2x128xf32, #tpu.memory_space<vmem>>, %arg2: memref<5x8x8xf32, #tpu.memory_space<vmem>>, %arg3: memref<1x128xf32, #tpu.memory_space<vmem>>) attributes {dimension_semantics = [#tpu.dimension_semantics<parallel>], iteration_bounds = array<i64: 1>, scalar_prefetch = 0 : i64, scratch_operands = 0 : i64, tpu.core_type = #tpu.core_type<tc>, window_params = [{transform_indices = @transform_0, window_bounds = array<i64: 2, 128>}, {pipeline_mode = #tpu.pipeline_mode<synchronous>, transform_indices = @transform_1, window_bounds = array<i64: 5, 8, 8>}, {transform_indices = @transform_2, window_bounds = array<i64: 1, 128>}]} {
    %c0 = arith.constant 0 : index
    %c0_0 = arith.constant 0 : index
    %0 = vector.load %arg1[%c0, %c0_0] : memref<2x128xf32, #tpu.memory_space<vmem>>, vector<2x128xf32>
    %cst = arith.constant 0.000000e+00 : f32
    %1 = vector.broadcast %cst : f32 to vector<5x128xf32>
    %cst_1 = arith.constant 1.000000e+00 : f32
    %2 = vector.broadcast %cst_1 : f32 to vector<1x128xf32>
    %3 = tpu.concatenate %0, %1, %2 in 0 : vector<2x128xf32>, vector<5x128xf32>, vector<1x128xf32> -> vector<8x128xf32>
    %c0_2 = arith.constant 0 : index
    %c0_3 = arith.constant 0 : index
    %c0_4 = arith.constant 0 : index
    %4 = vector.load %arg2[%c0_2, %c0_3, %c0_4] : memref<5x8x8xf32, #tpu.memory_space<vmem>>, vector<1x8x8xf32>
    %5 = vector.shape_cast %4 : vector<1x8x8xf32> to vector<8x8xf32>
    %cst_5 = arith.constant dense<0.000000e+00> : vector<8x128xf32>
    %6 = tpu.matmul %5, %3, %cst_5 {dimension_numbers = #tpu.dot_dimension_numbers<[1], [0], [0], [1], [0, 0, 1, 1], [], []>} : vector<8x8xf32>, vector<8x128xf32>, vector<8x128xf32> -> vector<8x128xf32>
    %cst_6 = arith.constant 0.000000e+00 : f32
    %7 = vector.broadcast %cst_6 : f32 to vector<8x128xf32>
    %8 = arith.maximumf %6, %7 : vector<8x128xf32>
    %c1 = arith.constant 1 : index
    %c0_7 = arith.constant 0 : index
    %c0_8 = arith.constant 0 : index
    %9 = vector.load %arg2[%c1, %c0_7, %c0_8] : memref<5x8x8xf32, #tpu.memory_space<vmem>>, vector<1x8x8xf32>
    %10 = vector.shape_cast %9 : vector<1x8x8xf32> to vector<8x8xf32>
    %cst_9 = arith.constant dense<0.000000e+00> : vector<8x128xf32>
    %11 = tpu.matmul %10, %8, %cst_9 {dimension_numbers = #tpu.dot_dimension_numbers<[1], [0], [0], [1], [0, 0, 1, 1], [], []>} : vector<8x8xf32>, vector<8x128xf32>, vector<8x128xf32> -> vector<8x128xf32>
    %cst_10 = arith.constant 0.000000e+00 : f32
    %12 = vector.broadcast %cst_10 : f32 to vector<8x128xf32>
    %13 = arith.maximumf %11, %12 : vector<8x128xf32>
    %c2 = arith.constant 2 : index
    %c0_11 = arith.constant 0 : index
    %c0_12 = arith.constant 0 : index
    %14 = vector.load %arg2[%c2, %c0_11, %c0_12] : memref<5x8x8xf32, #tpu.memory_space<vmem>>, vector<1x8x8xf32>
    %15 = vector.shape_cast %14 : vector<1x8x8xf32> to vector<8x8xf32>
    %cst_13 = arith.constant dense<0.000000e+00> : vector<8x128xf32>
    %16 = tpu.matmul %15, %13, %cst_13 {dimension_numbers = #tpu.dot_dimension_numbers<[1], [0], [0], [1], [0, 0, 1, 1], [], []>} : vector<8x8xf32>, vector<8x128xf32>, vector<8x128xf32> -> vector<8x128xf32>
    %cst_14 = arith.constant 0.000000e+00 : f32
    %17 = vector.broadcast %cst_14 : f32 to vector<8x128xf32>
    %18 = arith.maximumf %16, %17 : vector<8x128xf32>
    %c3 = arith.constant 3 : index
    %c0_15 = arith.constant 0 : index
    %c0_16 = arith.constant 0 : index
    %19 = vector.load %arg2[%c3, %c0_15, %c0_16] : memref<5x8x8xf32, #tpu.memory_space<vmem>>, vector<1x8x8xf32>
    %20 = vector.shape_cast %19 : vector<1x8x8xf32> to vector<8x8xf32>
    %cst_17 = arith.constant dense<0.000000e+00> : vector<8x128xf32>
    %21 = tpu.matmul %20, %18, %cst_17 {dimension_numbers = #tpu.dot_dimension_numbers<[1], [0], [0], [1], [0, 0, 1, 1], [], []>} : vector<8x8xf32>, vector<8x128xf32>, vector<8x128xf32> -> vector<8x128xf32>
    %cst_18 = arith.constant 0.000000e+00 : f32
    %22 = vector.broadcast %cst_18 : f32 to vector<8x128xf32>
    %23 = arith.maximumf %21, %22 : vector<8x128xf32>
    %c4 = arith.constant 4 : index
    %c0_19 = arith.constant 0 : index
    %c0_20 = arith.constant 0 : index
    %24 = vector.load %arg2[%c4, %c0_19, %c0_20] : memref<5x8x8xf32, #tpu.memory_space<vmem>>, vector<1x8x8xf32>
    %25 = vector.shape_cast %24 : vector<1x8x8xf32> to vector<8x8xf32>
    %cst_21 = arith.constant dense<0.000000e+00> : vector<8x128xf32>
    %26 = tpu.matmul %25, %23, %cst_21 {dimension_numbers = #tpu.dot_dimension_numbers<[1], [0], [0], [1], [0, 0, 1, 1], [], []>} : vector<8x8xf32>, vector<8x128xf32>, vector<8x128xf32> -> vector<8x128xf32>
    %27 = vector.extract_strided_slice %26 {offsets = [0, 0], sizes = [1, 128], strides = [1, 1]} : vector<8x128xf32> to vector<1x128xf32>
    %c0_22 = arith.constant 0 : index
    %c0_23 = arith.constant 0 : index
    %28 = vector.load %arg3[%c0_22, %c0_23] : memref<1x128xf32, #tpu.memory_space<vmem>>, vector<1x128xf32>
    tpu.vector_store %arg3[%c0_22, %c0_23], %27 {strides = array<i32>} : memref<1x128xf32, #tpu.memory_space<vmem>>, vector<1x128xf32>,
    return
  }
  func.func @transform_0(%arg0: i32) -> (i32, i32) {
    %c0_i32 = arith.constant 0 : i32
    %c0_i32_0 = arith.constant 0 : i32
    return %c0_i32, %arg0 : i32, i32
  }
  func.func @transform_1(%arg0: i32) -> (i32, i32, i32) {
    %c0_i32 = arith.constant 0 : i32
    %c0_i32_0 = arith.constant 0 : i32
    %c0_i32_1 = arith.constant 0 : i32
    %c0_i32_2 = arith.constant 0 : i32
    return %c0_i32, %c0_i32_0, %c0_i32_1 : i32, i32, i32
  }
  func.func @transform_2(%arg0: i32) -> (i32, i32) {
    %c0_i32 = arith.constant 0 : i32
    %c0_i32_0 = arith.constant 0 : i32
    return %c0_i32, %arg0 : i32, i32
  }
}

</mosaic_0001>

<llo_original>
// kernel: tpu_custom_call.1
$region0: #{tpu_custom_call.1}
  #allocation0 [shape = 'u32[]', space=smem, size = 0x4, offset = 0x4, fixed_abs, tag = 'smem constant byte address 0x4 - core index']
  #allocation1 [shape = 'u32[72,128]{1,0:T(1,128)}', space=vmem, size = 0x9000, scoped, tag = 'internal scratch']
  %s0 = inlined_call_operand.hbm [shape: f32[2,128], index: 0, kind: input, shape index: {}]
  %s1 = inlined_call_operand.hbm [shape: f32[5,8,8], index: 1, kind: input, shape index: {}]
  %s2 = inlined_call_operand.hbm [shape: f32[1,128], index: 2, kind: output, shape index: {}]
  %s3 = sld [smem:[#allocation0]]
  $region26: #{tpu_custom_call.1} parent=0
    _
  %s5 = ssub.s32 1, %s3
  %s6 = scalar_select 0, %s5, %s3
  $region1: #{tpu_custom_call.1} parent=0
    #allocation2 [shape = 'u8[1024]{0}', space=vmem, size = 0x400, scoped, tag = 'input window, operand 0, single buffered']
    #allocation3 [shape = 's32[1]{0}', space=sflag, size = 0x4, scoped, tag = 'scoped memory for tpu_custom_call.1']
    #allocation4 [shape = 's32[1]{0}', space=sflag, size = 0x4, scoped, tag = 'scoped memory for tpu_custom_call.1']
    #allocation5 [shape = 'u8[20480]{0}', space=vmem, size = 0x5000, scoped, tag = 'input window, operand 1, single buffered']
    #allocation6 [shape = 's32[1]{0}', space=sflag, size = 0x4, scoped, tag = 'scoped memory for tpu_custom_call.1']
    #allocation7 [shape = 'u8[512]{0}', space=vmem, size = 0x400, scoped, tag = 'output window, operand 0, single buffered']
    %7 = vsyncpa [#allocation3], 0
    %8 = vsyncpa [#allocation6], 0
    %9 = vsyncpa [#allocation4], 0
    // Predicated region
    $region2: #{tpu_custom_call.1} parent=1 // pred_check
      _
    $region3: #{tpu_custom_call.1} parent=1 // pred_check_branch
      %11 = sbr.rel (0) target = $region5
    $region4: #{tpu_custom_call.1} parent=1 // pred_region
      %13 = vsyncadd [#allocation3], 0
      %s15 = sshll.u32 %s0, 4
      %s16 = int_to_ptr.hbm [resolvable:$true] %s15
      %s17 = sshll.u32 [#allocation2], 4
      %s18 = int_to_ptr.vmem [resolvable:$true] %s17
      %20 = dma.hbm_to_vmem [thread:$0]  %s16, 32, %s18, [#allocation3]
    $region5: #{tpu_custom_call.1} parent=1 // pred_fallthru
      _
    // Predicated region
    $region6: #{tpu_custom_call.1} parent=1 // pred_check
      _
    $region7: #{tpu_custom_call.1} parent=1 // pred_check_branch
      %22 = sbr.rel (0) target = $region9
    $region8: #{tpu_custom_call.1} parent=1 // pred_region
      %24 = vsyncadd [#allocation6], 0
      %s25 = sshll.u32 %s1, 4
      %s26 = int_to_ptr.hbm [resolvable:$true] %s25
      %s27 = sshll.u32 [#allocation5], 4
      %s28 = int_to_ptr.vmem [resolvable:$true] %s27
      %33 = dma.hbm_to_vmem [thread:$0]  %s26, 640, %s28, [#allocation6], 128, 128, 8
    $region9: #{tpu_custom_call.1} parent=1 // pred_fallthru
      _
    // Predicated region
    $region10: #{tpu_custom_call.1} parent=1 // pred_check
      _
    $region11: #{tpu_custom_call.1} parent=1 // pred_check_branch
      %35 = sbr.rel (0) target = $region13
    $region12: #{tpu_custom_call.1} parent=1 // pred_region
      %37 = dma.done [#allocation3], 32
    $region13: #{tpu_custom_call.1} parent=1 // pred_fallthru
      _
    // Predicated region
    $region14: #{tpu_custom_call.1} parent=1 // pred_check
      _
    $region15: #{tpu_custom_call.1} parent=1 // pred_check_branch
      %39 = sbr.rel (0) target = $region17
    $region16: #{tpu_custom_call.1} parent=1 // pred_region
      %41 = dma.done [#allocation6], 640
    $region17: #{tpu_custom_call.1} parent=1 // pred_fallthru
      _
    %v42 = vld [vmem:[#allocation2] sm:$0x3]
    %vm43 = vcmask 1041408
    %v44 = vsel %vm43, %v42, 0.0
    %vm45 = vcmask 1046528
    %v46 = vsel %vm45, %v44, 1.0
    %v47 = vld [vmem:[#allocation5] sm:$0xff]
    %vm48 = vcmask 64512
    %v50 = vsel %vm48, %v47, 0
    %52 = vmatpush.msra.mxu0 0.0
    %53 = vmatpush.msra.mxu0 0.0
    %54 = vmatpush.msra.mxu0 0.0
    %55 = vmatpush.msra.mxu0 0.0
    %56 = vmatpush.msra.mxu0 0.0
    %57 = vmatpush.msra.mxu0 0.0
    %58 = vmatpush.msra.mxu0 0.0
    %59 = vmatpush.msra.mxu0 0.0
    %60 = vmatpush.msra.mxu0 0.0
    %61 = vmatpush.msra.mxu0 0.0
    %62 = vmatpush.msra.mxu0 0.0
    %63 = vmatpush.msra.mxu0 0.0
    %64 = vmatpush.msra.mxu0 0.0
    %65 = vmatpush.msra.mxu0 0.0
    %66 = vmatpush.msra.mxu0 0.0
    %67 = vmatpush.msra.mxu0 %v46
    %68 = vmatmul.f32.gmra.mxu0 %v50
    %v69 = vpop.f32.mrf.mxu0
    %v70 = vadd.f32 0.0, %v69
    %71 = vdwg.mxu0
    %v72 = vmax.f32 %v70, 0.0
    %s73 = scalar_lea.vmem [#allocation5], 8
    %v74 = vld [vmem:[%s73] sm:$0xff]
    %v76 = vsel %vm48, %v74, 0
    %78 = vmatpush.msra.mxu0 0.0
    %79 = vmatpush.msra.mxu0 0.0
    %80 = vmatpush.msra.mxu0 0.0
    %81 = vmatpush.msra.mxu0 0.0
    %82 = vmatpush.msra.mxu0 0.0
    %83 = vmatpush.msra.mxu0 0.0
    %84 = vmatpush.msra.mxu0 0.0
    %85 = vmatpush.msra.mxu0 0.0
    %86 = vmatpush.msra.mxu0 0.0
    %87 = vmatpush.msra.mxu0 0.0
    %88 = vmatpush.msra.mxu0 0.0
    %89 = vmatpush.msra.mxu0 0.0
    %90 = vmatpush.msra.mxu0 0.0
    %91 = vmatpush.msra.mxu0 0.0
    %92 = vmatpush.msra.mxu0 0.0
    %93 = vmatpush.msra.mxu0 %v72
    %94 = vmatmul.f32.gmra.mxu0 %v76
    %v95 = vpop.f32.mrf.mxu0
    %v96 = vadd.f32 0.0, %v95
    %97 = vdwg.mxu0
    %v98 = vmax.f32 %v96, 0.0
    %s99 = scalar_lea.vmem [#allocation5], 16
    %v100 = vld [vmem:[%s99] sm:$0xff]
    %v102 = vsel %vm48, %v100, 0
    %104 = vmatpush.msra.mxu0 0.0
    %105 = vmatpush.msra.mxu0 0.0
    %106 = vmatpush.msra.mxu0 0.0
    %107 = vmatpush.msra.mxu0 0.0
    %108 = vmatpush.msra.mxu0 0.0
    %109 = vmatpush.msra.mxu0 0.0
    %110 = vmatpush.msra.mxu0 0.0
    %111 = vmatpush.msra.mxu0 0.0
    %112 = vmatpush.msra.mxu0 0.0
    %113 = vmatpush.msra.mxu0 0.0
    %114 = vmatpush.msra.mxu0 0.0
    %115 = vmatpush.msra.mxu0 0.0
    %116 = vmatpush.msra.mxu0 0.0
    %117 = vmatpush.msra.mxu0 0.0
    %118 = vmatpush.msra.mxu0 0.0
    %119 = vmatpush.msra.mxu0 %v98
    %120 = vmatmul.f32.gmra.mxu0 %v102
    %v121 = vpop.f32.mrf.mxu0
    %v122 = vadd.f32 0.0, %v121
    %123 = vdwg.mxu0
    %v124 = vmax.f32 %v122, 0.0
    %s125 = scalar_lea.vmem [#allocation5], 24
    %v126 = vld [vmem:[%s125] sm:$0xff]
    %v128 = vsel %vm48, %v126, 0
    %130 = vmatpush.msra.mxu0 0.0
    %131 = vmatpush.msra.mxu0 0.0
    %132 = vmatpush.msra.mxu0 0.0
    %133 = vmatpush.msra.mxu0 0.0
    %134 = vmatpush.msra.mxu0 0.0
    %135 = vmatpush.msra.mxu0 0.0
    %136 = vmatpush.msra.mxu0 0.0
    %137 = vmatpush.msra.mxu0 0.0
    %138 = vmatpush.msra.mxu0 0.0
    %139 = vmatpush.msra.mxu0 0.0
    %140 = vmatpush.msra.mxu0 0.0
    %141 = vmatpush.msra.mxu0 0.0
    %142 = vmatpush.msra.mxu0 0.0
    %143 = vmatpush.msra.mxu0 0.0
    %144 = vmatpush.msra.mxu0 0.0
    %145 = vmatpush.msra.mxu0 %v124
    %146 = vmatmul.f32.gmra.mxu0 %v128
    %v147 = vpop.f32.mrf.mxu0
    %v148 = vadd.f32 0.0, %v147
    %149 = vdwg.mxu0
    %v150 = vmax.f32 %v148, 0.0
    %s151 = scalar_lea.vmem [#allocation5], 32
    %v152 = vld [vmem:[%s151] sm:$0xff]
    %v154 = vsel %vm48, %v152, 0
    %156 = vmatpush.msra.mxu0 0.0
    %157 = vmatpush.msra.mxu0 0.0
    %158 = vmatpush.msra.mxu0 0.0
    %159 = vmatpush.msra.mxu0 0.0
    %160 = vmatpush.msra.mxu0 0.0
    %161 = vmatpush.msra.mxu0 0.0
    %162 = vmatpush.msra.mxu0 0.0
    %163 = vmatpush.msra.mxu0 0.0
    %164 = vmatpush.msra.mxu0 0.0
    %165 = vmatpush.msra.mxu0 0.0
    %166 = vmatpush.msra.mxu0 0.0
    %167 = vmatpush.msra.mxu0 0.0
    %168 = vmatpush.msra.mxu0 0.0
    %169 = vmatpush.msra.mxu0 0.0
    %170 = vmatpush.msra.mxu0 0.0
    %171 = vmatpush.msra.mxu0 %v150
    %172 = vmatmul.f32.gmra.mxu0 %v154
    %v173 = vpop.f32.mrf.mxu0
    %v174 = vadd.f32 0.0, %v173
    %175 = vdwg.mxu0
    %176 = vst [vmem:[#allocation7] sm:$0x1] %v174
    // Predicated region
    $region18: #{tpu_custom_call.1} parent=1 // pred_check
      _
    $region19: #{tpu_custom_call.1} parent=1 // pred_check_branch
      %178 = sbr.rel (0) target = $region21
    $region20: #{tpu_custom_call.1} parent=1 // pred_region
      %180 = vsyncadd [#allocation4], 0
      %s182 = sshll.u32 [#allocation7], 4
      %s183 = int_to_ptr.vmem [resolvable:$true] %s182
      %s184 = sshll.u32 %s2, 4
      %s185 = int_to_ptr.hbm [resolvable:$true] %s184
      %187 = dma.vmem_to_hbm [thread:$0]  %s183, 16, %s185, [#allocation4]
    $region21: #{tpu_custom_call.1} parent=1 // pred_fallthru
      _
    // Predicated region
    $region22: #{tpu_custom_call.1} parent=1 // pred_check
      _
    $region23: #{tpu_custom_call.1} parent=1 // pred_check_branch
      %189 = sbr.rel (0) target = $region25
    $region24: #{tpu_custom_call.1} parent=1 // pred_region
      %191 = dma.done [#allocation4], 16
    $region25: #{tpu_custom_call.1} parent=1 // pred_fallthru
      _
    %192 = vsyncpa [#allocation3], 1
    %193 = vsyncpa [#allocation6], 1
    %194 = vsyncpa [#allocation4], 1

</llo_original>
